<compile_context>
chip_gen: v7x
topology: tpu7x:2x2x1
jax: 0.10.0
libtpu: 0.0.40
codegen_flags: <defaults>
</compile_context>

<pallas_src>
import re
from typing import Callable, Optional, Sequence

import jax
import jax.numpy as jnp
from jax.experimental import pallas as pl
from jax.experimental.pallas import tpu as pltpu


# ----------------------------------------------------------------------------
# Small helpers
# ----------------------------------------------------------------------------
def _round_up(x: int, m: int) -> int:
    return ((x + m - 1) // m) * m


def _tpu_generation() -> int:
    """Best-effort TPU generation (5, 6, 7, ...) from device_kind; 0 if unknown."""
    try:
        kind = jax.devices()[0].device_kind.lower()
    except Exception:
        return 0
    m = re.search(r"(\d+)", kind)
    return int(m.group(1)) if m else 0


def _tile_targets(gen: int):
    """(tm, tn, tk) targets per TPU generation (see review: machine balance)."""
    if gen >= 7:        # v7x: 64 MiB VMEM/TC, 3.2 TB/s HBM -> ~310 FLOP/B balance
        return 512, 512, 512
    if gen == 6:        # v6e: 128 MiB VMEM, 918 TF/s bf16 -> ~680 FLOP/B balance
        return 1024, 1024, 1024
    if gen == 5:        # v5e: 16 MiB scoped default, ~240 FLOP/B balance
        return 512, 512, 512
    return 512, 512, 512


def _vmem_limit_bytes(gen: int) -> Optional[int]:
    """Scoped-VMEM budget to request per generation (None -> compiler default)."""
    if gen >= 7:
        return 48 * 1024 * 1024     # 64 MiB physical per TC
    if gen == 6:
        return 96 * 1024 * 1024     # 128 MiB physical
    if gen == 5:
        return 64 * 1024 * 1024     # 128 MiB physical
    return None


def _pick_tile(padded_dim: int, target: int) -> int:
    """Largest 128-multiple tile <= target that evenly divides padded_dim."""
    tile = 128
    t = 256
    while t <= min(target, padded_dim):
        if padded_dim % t == 0:
            tile = t
        t += 128
    return tile


# ----------------------------------------------------------------------------
# Pallas kernel: y = x @ W + bias_scale * b
# ----------------------------------------------------------------------------
def _linear_scaled_bias_kernel(scale_ref, x_ref, w_ref, b_ref, o_ref, acc_ref):
    # scale_ref : SMEM (1, 1)  f32   -- the filtered kwarg "bias_scale"
    # x_ref     : VMEM (tm, tk) bf16
    # w_ref     : VMEM (tk, tn) bf16
    # b_ref     : VMEM (1,  tn) f32
    # o_ref     : VMEM (tm, tn) out dtype (resident across the K axis)
    # acc_ref   : VMEM (tm, tn) f32 scratch accumulator
    k = pl.program_id(2)

    @pl.when(k == 0)
    def _init():
        acc_ref[...] = jnp.zeros_like(acc_ref)

    acc_ref[...] += jnp.dot(x_ref[...], w_ref[...],
                            preferred_element_type=jnp.float32)

    @pl.when(k == pl.num_programs(2) - 1)
    def _finalize():
        # Bias scaling happens exactly once per (i, j) tile, in the epilogue.
        o_ref[...] = (acc_ref[...] + scale_ref[0, 0] * b_ref[...]).astype(o_ref.dtype)


def linear_scaled_bias(x2d, w_padded, b_padded, bias_scale, *, n_out,
                       out_dtype=None):
    """Compute x2d @ W + bias_scale * b with a tiled Pallas TPU kernel.

    x2d      : [M, K]  float32 or bfloat16 activations (unpadded).
    w_padded : [Kp, Np] bfloat16 weight, Kp/Np multiples of 128 (pre-padded).
    b_padded : [1, Np]  float32 bias (pre-padded).
    n_out    : logical output width N (<= Np).
    Returns  : [M, n_out] in out_dtype (default: x2d.dtype).
    """
    if not jnp.issubdtype(x2d.dtype, jnp.floating):
        raise TypeError(f"linear_scaled_bias: unsupported input dtype {x2d.dtype}")
    M, K = x2d.shape
    Kp, Np = w_padded.shape
    assert Kp == _round_up(K, 128) and Np % 128 == 0
    out_dtype = jnp.dtype(out_dtype) if out_dtype is not None else jnp.dtype(x2d.dtype)

    gen = _tpu_generation()
    tm_t, tn_t, tk_t = _tile_targets(gen)

    # Pad M only to a multiple of 128; tiles are 128-multiples dividing the
    # padded extents (padding is decoupled from tile size).
    Mp = _round_up(M, 128)
    tm = _pick_tile(Mp, tm_t)
    tn = _pick_tile(Np, tn_t)
    tk = _pick_tile(Kp, tk_t)

    # Cast to bf16 BEFORE padding (pad half the bytes). Zero K-padding
    # contributes exact zero products; M padding is sliced off afterwards.
    xp = jnp.pad(x2d.astype(jnp.bfloat16), ((0, Mp - M), (0, Kp - K)))
    scale = jnp.asarray(bias_scale, jnp.float32).reshape(1, 1)

    grid = (Mp // tm, Np // tn, Kp // tk)

    # bytes_accessed accounts for re-streaming: x is read Np/tn times, w is
    # read Mp/tm times, bias Mp/tm times, output written once.
    cost = pl.CostEstimate(
        flops=2 * Mp * Kp * Np,
        transcendentals=0,
        bytes_accessed=int(xp.size * 2 * (Np // tn)
                           + w_padded.size * 2 * (Mp // tm)
                           + b_padded.size * 4 * (Mp // tm)
                           + Mp * Np * out_dtype.itemsize),
    )

    # On v7x, shard the grid across the two TensorCores via CORE_PARALLEL on
    # whichever independent axis actually has >= 2 tiles.
    m_sem, n_sem = "parallel", "parallel"
    if gen >= 7:
        if grid[0] >= 2:
            m_sem = pltpu.CORE_PARALLEL
        elif grid[1] >= 2:
            n_sem = pltpu.CORE_PARALLEL
    cp_kwargs = dict(dimension_semantics=(m_sem, n_sem, "arbitrary"))
    vlim = _vmem_limit_bytes(gen)
    if vlim is not None:
        cp_kwargs["vmem_limit_bytes"] = vlim

    yp = pl.pallas_call(
        _linear_scaled_bias_kernel,
        out_shape=jax.ShapeDtypeStruct((Mp, Np), out_dtype),
        grid_spec=pltpu.PrefetchScalarGridSpec(
            num_scalar_prefetch=0,
            grid=grid,
            in_specs=[
                pl.BlockSpec(memory_space=pltpu.MemorySpace.SMEM),  # bias_scale
                pl.BlockSpec((tm, tk), lambda i, j, k: (i, k)),     # x tile
                pl.BlockSpec((tk, tn), lambda i, j, k: (k, j)),     # w tile
                pl.BlockSpec((1, tn), lambda i, j, k: (0, j)),      # bias tile
            ],
            out_specs=pl.BlockSpec((tm, tn), lambda i, j, k: (i, j)),
            scratch_shapes=[pltpu.VMEM((tm, tn), jnp.float32)],
        ),
        compiler_params=pltpu.CompilerParams(**cp_kwargs),
        cost_estimate=cost,
    )(scale, xp, w_padded, b_padded)

    # NOTE: pipeline_mode=pl.Buffered(3) on the x/w specs is a further 5-15%
    # knob if profiling shows exposed DMA at these tile sizes; left at the
    # default double-buffering here.
    return yp[:M, :n_out]


# ----------------------------------------------------------------------------
# The wrapped "module": Linear with an optional `bias_scale` kwarg.  Returns a
# tuple (output, aux) so that `use_first_output` has something to do.
# ----------------------------------------------------------------------------
class ScaledBiasLinear:
    def __init__(self, h_in: int, h_out: int, key, *, compute_aux: bool = False,
                 out_dtype=None):
        k_w, k_b = jax.random.split(key)
        # PyTorch nn.Linear stores [out, in]; we keep the transpose [in, out]
        # so the kernel can consume it directly.
        self.weight = jax.random.normal(k_w, (h_in, h_out), jnp.float32) * 0.05
        self.bias = jax.random.normal(k_b, (1, h_out), jnp.float32) * 0.1
        self.h_in, self.h_out = h_in, h_out
        self.compute_aux = compute_aux
        self.out_dtype = out_dtype  # None -> inherit from input (f32 in the demo)

        # Pre-cast + pre-pad params ONCE (bf16 weight / f32 bias, 128-aligned),
        # instead of re-padding + re-casting from HBM on every forward.
        Kp, Np = _round_up(h_in, 128), _round_up(h_out, 128)
        self.weight_padded = jnp.pad(self.weight.astype(jnp.bfloat16),
                                     ((0, Kp - h_in), (0, Np - h_out)))
        self.bias_padded = jnp.pad(self.bias.astype(jnp.float32),
                                   ((0, 0), (0, Np - h_out)))

    def __call__(self, x, *, bias_scale=1.0):
        B, S, H_in = x.shape
        assert H_in == self.h_in
        x2d = x.reshape(B * S, H_in)
        y2d = linear_scaled_bias(x2d, self.weight_padded, self.bias_padded,
                                 bias_scale, n_out=self.h_out,
                                 out_dtype=self.out_dtype)
        y = y2d.reshape(B, S, self.h_out)
        # Extra output kept so the module returns a tuple (ActiveKwargs'
        # use_first_output path).  The full-pass sum is only computed when
        # explicitly requested, per the performance review.
        aux = jnp.sum(y) if self.compute_aux else None
        return (y, aux)


# ----------------------------------------------------------------------------
# ActiveKwargs: faithful port of the wrapper semantics (host-side glue).
# ----------------------------------------------------------------------------
class ActiveKwargs:
    """Filter kwargs down to `active_keys`, call module, optionally take output[0]."""

    def __init__(self, module: Callable, active_keys: Sequence[str],
                 use_first_output: bool = False):
        self.module = module
        self.active_keys = set(active_keys)
        self.use_first_output = use_first_output

    def __call__(self, input, *args, **kwargs):
        kwargs = {k: v for k, v in kwargs.items() if k in self.active_keys}
        output = self.module(input, *args, **kwargs)
        if self.use_first_output and not isinstance(output, jnp.ndarray):
            output = output[0]
        return output


# ----------------------------------------------------------------------------
if __name__ == "__main__":
    B, S, H_in, H_out = 2, 8, 32, 32

    key = jax.random.PRNGKey(0)
    k_x, k_mod = jax.random.split(key)
    x = jax.random.normal(k_x, (B, S, H_in), jnp.float32)

    inner = ScaledBiasLinear(H_in, H_out, k_mod)
    layer = ActiveKwargs(inner, active_keys=("bias_scale",), use_first_output=True)

    # "inactive_junk" must be dropped by the kwarg filter (it is not accepted
    # by the wrapped module); "bias_scale" is active and forwarded.
    out = layer(x, bias_scale=2.0, inactive_junk=jnp.zeros((3,)))
    out = jax.block_until_ready(out)
    assert out.shape == (B, S, H_out)

    # Reference check: same math with bf16-rounded operands + f32 accumulate
    # (matches the kernel's bf16 MXU path), plus a loose check vs pure f32.
    xb = x.reshape(B * S, H_in).astype(jnp.bfloat16).astype(jnp.float32)
    wb = inner.weight.astype(jnp.bfloat16).astype(jnp.float32)
    ref_bf16 = (xb @ wb + 2.0 * inner.bias).reshape(B, S, H_out)
    ref_f32 = (x.reshape(B * S, H_in) @ inner.weight + 2.0 * inner.bias
               ).reshape(B, S, H_out)
    assert jnp.allclose(out.astype(jnp.float32), ref_bf16, atol=2e-2, rtol=2e-2)
    assert jnp.allclose(out.astype(jnp.float32), ref_f32, atol=5e-2, rtol=5e-2)

    print("KERNEL_OK")
</pallas_src>

<mosaic_0001>
module attributes {stable_mosaic.version = 11 : i64} {
  func.func @_linear_scaled_bias_kernel(%arg0: i32, %arg1: i32, %arg2: i32, %arg3: memref<1x1xf32, #tpu.memory_space<smem>>, %arg4: memref<128x128xbf16, #tpu.memory_space<vmem>>, %arg5: memref<128x128xbf16, #tpu.memory_space<vmem>>, %arg6: memref<1x128xf32, #tpu.memory_space<vmem>>, %arg7: memref<128x128xf32, #tpu.memory_space<vmem>>, %arg8: memref<128x128xf32, #tpu.memory_space<vmem>>) attributes {dimension_semantics = [#tpu.dimension_semantics<parallel>, #tpu.dimension_semantics<parallel>, #tpu.dimension_semantics<arbitrary>], iteration_bounds = array<i64: 1, 1, 1>, scalar_prefetch = 0 : i64, scratch_operands = 1 : i64, tpu.core_type = #tpu.core_type<tc>, window_params = [{transform_indices = @transform_0, window_bounds = array<i64: 1, 1>}, {transform_indices = @transform_1, window_bounds = array<i64: 128, 128>}, {transform_indices = @transform_2, window_bounds = array<i64: 128, 128>}, {transform_indices = @transform_3, window_bounds = array<i64: 1, 128>}, {transform_indices = @transform_4, window_bounds = array<i64: 128, 128>}]} {
    %c0_i32 = arith.constant 0 : i32
    %0 = arith.cmpi eq, %arg2, %c0_i32 : i32
    %1 = arith.extui %0 : i1 to i32
    %c0_i32_0 = arith.constant 0 : i32
    %2 = arith.cmpi ne, %1, %c0_i32_0 : i32
    scf.if %2 {
      %cst_10 = arith.constant 0.000000e+00 : f32
      %12 = vector.broadcast %cst_10 : f32 to vector<128x128xf32>
      %c0_11 = arith.constant 0 : index
      %c0_12 = arith.constant 0 : index
      %13 = vector.load %arg8[%c0_11, %c0_12] : memref<128x128xf32, #tpu.memory_space<vmem>>, vector<128x128xf32>
      tpu.vector_store %arg8[%c0_11, %c0_12], %12 {strides = array<i32>} : memref<128x128xf32, #tpu.memory_space<vmem>>, vector<128x128xf32>,
    } else {
    }
    %c0 = arith.constant 0 : index
    %c0_1 = arith.constant 0 : index
    %3 = vector.load %arg8[%c0, %c0_1] : memref<128x128xf32, #tpu.memory_space<vmem>>, vector<128x128xf32>
    %c0_2 = arith.constant 0 : index
    %c0_3 = arith.constant 0 : index
    %4 = vector.load %arg4[%c0_2, %c0_3] : memref<128x128xbf16, #tpu.memory_space<vmem>>, vector<128x128xbf16>
    %c0_4 = arith.constant 0 : index
    %c0_5 = arith.constant 0 : index
    %5 = vector.load %arg5[%c0_4, %c0_5] : memref<128x128xbf16, #tpu.memory_space<vmem>>, vector<128x128xbf16>
    %cst = arith.constant dense<0.000000e+00> : vector<128x128xf32>
    %6 = tpu.matmul %4, %5, %cst {dimension_numbers = #tpu.dot_dimension_numbers<[1], [0], [0], [1], [0, 0, 1, 1], [], []>} : vector<128x128xbf16>, vector<128x128xbf16>, vector<128x128xf32> -> vector<128x128xf32>
    %7 = arith.addf %3, %6 : vector<128x128xf32>
    %c0_6 = arith.constant 0 : index
    %c0_7 = arith.constant 0 : index
    %8 = vector.load %arg8[%c0_6, %c0_7] : memref<128x128xf32, #tpu.memory_space<vmem>>, vector<128x128xf32>
    tpu.vector_store %arg8[%c0_6, %c0_7], %7 {strides = array<i32>} : memref<128x128xf32, #tpu.memory_space<vmem>>, vector<128x128xf32>,
    %c0_i32_8 = arith.constant 0 : i32
    %9 = arith.cmpi eq, %arg2, %c0_i32_8 : i32
    %10 = arith.extui %9 : i1 to i32
    %c0_i32_9 = arith.constant 0 : i32
    %11 = arith.cmpi ne, %10, %c0_i32_9 : i32
    scf.if %11 {
      %c0_10 = arith.constant 0 : index
      %c0_11 = arith.constant 0 : index
      %12 = vector.load %arg8[%c0_10, %c0_11] : memref<128x128xf32, #tpu.memory_space<vmem>>, vector<128x128xf32>
      %c0_12 = arith.constant 0 : index
      %c0_13 = arith.constant 0 : index
      %13 = memref.load %arg3[%c0_12, %c0_13] : memref<1x1xf32, #tpu.memory_space<smem>>
      %c0_14 = arith.constant 0 : index
      %c0_15 = arith.constant 0 : index
      %14 = vector.load %arg6[%c0_14, %c0_15] : memref<1x128xf32, #tpu.memory_space<vmem>>, vector<1x128xf32>
      %15 = vector.broadcast %13 : f32 to vector<1x128xf32>
      %16 = arith.mulf %15, %14 : vector<1x128xf32>
      %17 = vector.broadcast %16 : vector<1x128xf32> to vector<128x128xf32>
      %18 = arith.addf %12, %17 : vector<128x128xf32>
      %c0_16 = arith.constant 0 : index
      %c0_17 = arith.constant 0 : index
      %19 = vector.load %arg7[%c0_16, %c0_17] : memref<128x128xf32, #tpu.memory_space<vmem>>, vector<128x128xf32>
      tpu.vector_store %arg7[%c0_16, %c0_17], %18 {strides = array<i32>} : memref<128x128xf32, #tpu.memory_space<vmem>>, vector<128x128xf32>,
    } else {
    }
    return
  }
  func.func @transform_0(%arg0: i32, %arg1: i32, %arg2: i32) -> (i32, i32) {
    %c0_i32 = arith.constant 0 : i32
    %c0_i32_0 = arith.constant 0 : i32
    %c0_i32_1 = arith.constant 0 : i32
    return %c0_i32, %c0_i32_0 : i32, i32
  }
  func.func @transform_1(%arg0: i32, %arg1: i32, %arg2: i32) -> (i32, i32) {
    %c0_i32 = arith.constant 0 : i32
    return %arg0, %arg2 : i32, i32
  }
  func.func @transform_2(%arg0: i32, %arg1: i32, %arg2: i32) -> (i32, i32) {
    %c0_i32 = arith.constant 0 : i32
    return %arg2, %arg1 : i32, i32
  }
  func.func @transform_3(%arg0: i32, %arg1: i32, %arg2: i32) -> (i32, i32) {
    %c0_i32 = arith.constant 0 : i32
    %c0_i32_0 = arith.constant 0 : i32
    return %c0_i32, %arg1 : i32, i32
  }
  func.func @transform_4(%arg0: i32, %arg1: i32, %arg2: i32) -> (i32, i32) {
    %c0_i32 = arith.constant 0 : i32
    return %arg0, %arg1 : i32, i32
  }
}

</mosaic_0001>

<llo_original>
// kernel: tpu_custom_call.1
$region0: #{tpu_custom_call.1}
  #allocation0 [shape = 'u32[]', space=smem, size = 0x4, offset = 0x4, fixed_abs, tag = 'smem constant byte address 0x4 - core index']
  #allocation1 [shape = 'u32[144,128]{1,0:T(1,128)}', space=vmem, size = 0x12000, scoped, tag = 'internal scratch']
  #allocation2 [shape = 'f32[128,128]{1,0:T(8,128)}', space=vmem, size = 0x10000, scoped, tag = 'scratch operand']
  #allocation3 [shape = 'f32[1,1]{1,0:T(1,128)S(6)}', space=smem, size = 0x200, scoped, tag = 'scoped memory for tpu_custom_call.1']
  %s0 = inlined_call_operand.<no memory space> [shape: f32[1,1], index: 0, kind: input, shape index: {}]
  %s1 = inlined_call_operand.hbm [shape: bf16[128,128], index: 1, kind: input, shape index: {}]
  %s2 = inlined_call_operand.hbm [shape: bf16[128,128], index: 2, kind: input, shape index: {}]
  %s3 = inlined_call_operand.vmem [shape: f32[1,128], index: 3, kind: input, shape index: {}]
  %s4 = inlined_call_operand.hbm [shape: f32[128,128], index: 4, kind: output, shape index: {}]
  %s5 = sld [smem:[#allocation0]]
  $region42: #{tpu_custom_call.1} parent=0
    _
  %s7 = ssub.s32 1, %s5
  %s8 = scalar_select 0, %s7, %s5
  %9 = sst [smem:[#allocation3]] %s0
  $region1: #{tpu_custom_call.1} parent=0
    #allocation4 [shape = 'u8[32768]{0}', space=vmem, size = 0x8000, scoped, tag = 'input window, operand 1, single buffered']
    #allocation5 [shape = 's32[1]{0}', space=sflag, size = 0x4, scoped, tag = 'scoped memory for tpu_custom_call.1']
    #allocation6 [shape = 's32[1]{0}', space=sflag, size = 0x4, scoped, tag = 'scoped memory for tpu_custom_call.1']
    #allocation7 [shape = 'u8[32768]{0}', space=vmem, size = 0x8000, scoped, tag = 'input window, operand 2, single buffered']
    #allocation8 [shape = 's32[1]{0}', space=sflag, size = 0x4, scoped, tag = 'scoped memory for tpu_custom_call.1']
    #allocation9 [shape = 'u8[65536]{0}', space=vmem, size = 0x10000, scoped, tag = 'output window, operand 0, single buffered']
    %10 = vsyncpa [#allocation5], 0
    %11 = vsyncpa [#allocation8], 0
    %12 = vsyncpa [#allocation6], 0
    // Predicated region
    $region2: #{tpu_custom_call.1} parent=1 // pred_check
      _
    $region3: #{tpu_custom_call.1} parent=1 // pred_check_branch
      %14 = sbr.rel (0) target = $region5
    $region4: #{tpu_custom_call.1} parent=1 // pred_region
      _
    $region5: #{tpu_custom_call.1} parent=1 // pred_fallthru
      _
    // Predicated region
    $region6: #{tpu_custom_call.1} parent=1 // pred_check
      _
    $region7: #{tpu_custom_call.1} parent=1 // pred_check_branch
      %16 = sbr.rel (0) target = $region9
    $region8: #{tpu_custom_call.1} parent=1 // pred_region
      %s18 = ssub.s32 1024, 1024
      %19 = vsyncadd [#allocation5], %s18
      %s20 = sshll.u32 [#allocation4], 4
      %s21 = int_to_ptr.vmem [resolvable:$true] %s20
      %26 = dma.hbm_to_vmem [thread:$0]  %s1, 1024, %s21, [#allocation5], 64, 64, 4
    $region9: #{tpu_custom_call.1} parent=1 // pred_fallthru
      _
    // Predicated region
    $region10: #{tpu_custom_call.1} parent=1 // pred_check
      _
    $region11: #{tpu_custom_call.1} parent=1 // pred_check_branch
      %28 = sbr.rel (0) target = $region13
    $region12: #{tpu_custom_call.1} parent=1 // pred_region
      %s30 = ssub.s32 1024, 1024
      %31 = vsyncadd [#allocation8], %s30
      %s32 = sshll.u32 [#allocation7], 4
      %s33 = int_to_ptr.vmem [resolvable:$true] %s32
      %38 = dma.hbm_to_vmem [thread:$0]  %s2, 1024, %s33, [#allocation8], 64, 64, 4
    $region13: #{tpu_custom_call.1} parent=1 // pred_fallthru
      _
    // Predicated region
    $region14: #{tpu_custom_call.1} parent=1 // pred_check
      _
    $region15: #{tpu_custom_call.1} parent=1 // pred_check_branch
      %40 = sbr.rel (0) target = $region17
    $region16: #{tpu_custom_call.1} parent=1 // pred_region
      _
    $region17: #{tpu_custom_call.1} parent=1 // pred_fallthru
      _
    // Predicated region
    $region18: #{tpu_custom_call.1} parent=1 // pred_check
      _
    $region19: #{tpu_custom_call.1} parent=1 // pred_check_branch
      %42 = sbr.rel (0) target = $region21
    $region20: #{tpu_custom_call.1} parent=1 // pred_region
      %43 = dma.done [#allocation5], 1024
    $region21: #{tpu_custom_call.1} parent=1 // pred_fallthru
      _
    // Predicated region
    $region22: #{tpu_custom_call.1} parent=1 // pred_check
      _
    $region23: #{tpu_custom_call.1} parent=1 // pred_check_branch
      %45 = sbr.rel (0) target = $region25
    $region24: #{tpu_custom_call.1} parent=1 // pred_region
      %46 = dma.done [#allocation8], 1024
    $region25: #{tpu_custom_call.1} parent=1 // pred_fallthru
      _
    %p48 = scmp.eq.s32.totalorder 0, 0
    // Predicated region
    $region26: #{tpu_custom_call.1} parent=1 // pred_check
      %p49 = pneg %p48
    $region27: #{tpu_custom_call.1} parent=1 // pred_check_branch
      %51 = sbr.rel (%p49) target = $region29
    $region28: #{tpu_custom_call.1} parent=1 // pred_region
      %52 = vst [vmem:[#allocation2] sm:$0xff] 0.0
      %53 = vst [vmem:[#allocation2 + $0x8] sm:$0xff] 0.0
      %54 = vst [vmem:[#allocation2 + $0x10] sm:$0xff] 0.0
      %55 = vst [vmem:[#allocation2 + $0x18] sm:$0xff] 0.0
      %56 = vst [vmem:[#allocation2 + $0x20] sm:$0xff] 0.0
      %57 = vst [vmem:[#allocation2 + $0x28] sm:$0xff] 0.0
      %58 = vst [vmem:[#allocation2 + $0x30] sm:$0xff] 0.0
      %59 = vst [vmem:[#allocation2 + $0x38] sm:$0xff] 0.0
      %60 = vst [vmem:[#allocation2 + $0x40] sm:$0xff] 0.0
      %61 = vst [vmem:[#allocation2 + $0x48] sm:$0xff] 0.0
      %62 = vst [vmem:[#allocation2 + $0x50] sm:$0xff] 0.0
      %63 = vst [vmem:[#allocation2 + $0x58] sm:$0xff] 0.0
      %64 = vst [vmem:[#allocation2 + $0x60] sm:$0xff] 0.0
      %65 = vst [vmem:[#allocation2 + $0x68] sm:$0xff] 0.0
      %66 = vst [vmem:[#allocation2 + $0x70] sm:$0xff] 0.0
      %67 = vst [vmem:[#allocation2 + $0x78] sm:$0xff] 0.0
    $region29: #{tpu_custom_call.1} parent=1 // pred_fallthru
      _
    %v68 = vld [vmem:[#allocation2] sm:$0xff]
    %v69 = vld [vmem:[#allocation2 + $0x8] sm:$0xff]
    %v70 = vld [vmem:[#allocation2 + $0x10] sm:$0xff]
    %v71 = vld [vmem:[#allocation2 + $0x18] sm:$0xff]
    %v72 = vld [vmem:[#allocation2 + $0x20] sm:$0xff]
    %v73 = vld [vmem:[#allocation2 + $0x28] sm:$0xff]
    %v74 = vld [vmem:[#allocation2 + $0x30] sm:$0xff]
    %v75 = vld [vmem:[#allocation2 + $0x38] sm:$0xff]
    %v76 = vld [vmem:[#allocation2 + $0x40] sm:$0xff]
    %v77 = vld [vmem:[#allocation2 + $0x48] sm:$0xff]
    %v78 = vld [vmem:[#allocation2 + $0x50] sm:$0xff]
    %v79 = vld [vmem:[#allocation2 + $0x58] sm:$0xff]
    %v80 = vld [vmem:[#allocation2 + $0x60] sm:$0xff]
    %v81 = vld [vmem:[#allocation2 + $0x68] sm:$0xff]
    %v82 = vld [vmem:[#allocation2 + $0x70] sm:$0xff]
    %v83 = vld [vmem:[#allocation2 + $0x78] sm:$0xff]
    %v84 = vld [vmem:[#allocation4] sm:$0xf]
    %v85 = vld [vmem:[#allocation4 + $0x4] sm:$0xf]
    %v86 = vld [vmem:[#allocation4 + $0x8] sm:$0xf]
    %v87 = vld [vmem:[#allocation4 + $0xc] sm:$0xf]
    %v88 = vld [vmem:[#allocation4 + $0x10] sm:$0xf]
    %v89 = vld [vmem:[#allocation4 + $0x14] sm:$0xf]
    %v90 = vld [vmem:[#allocation4 + $0x18] sm:$0xf]
    %v91 = vld [vmem:[#allocation4 + $0x1c] sm:$0xf]
    %v92 = vld [vmem:[#allocation4 + $0x20] sm:$0xf]
    %v93 = vld [vmem:[#allocation4 + $0x24] sm:$0xf]
    %v94 = vld [vmem:[#allocation4 + $0x28] sm:$0xf]
    %v95 = vld [vmem:[#allocation4 + $0x2c] sm:$0xf]
    %v96 = vld [vmem:[#allocation4 + $0x30] sm:$0xf]
    %v97 = vld [vmem:[#allocation4 + $0x34] sm:$0xf]
    %v98 = vld [vmem:[#allocation4 + $0x38] sm:$0xf]
    %v99 = vld [vmem:[#allocation4 + $0x3c] sm:$0xf]
    %v100 = vld [vmem:[#allocation7] sm:$0xf]
    %v101 = vld [vmem:[#allocation7 + $0x4] sm:$0xf]
    %v102 = vld [vmem:[#allocation7 + $0x8] sm:$0xf]
    %v103 = vld [vmem:[#allocation7 + $0xc] sm:$0xf]
    %v104 = vld [vmem:[#allocation7 + $0x10] sm:$0xf]
    %v105 = vld [vmem:[#allocation7 + $0x14] sm:$0xf]
    %v106 = vld [vmem:[#allocation7 + $0x18] sm:$0xf]
    %v107 = vld [vmem:[#allocation7 + $0x1c] sm:$0xf]
    %v108 = vld [vmem:[#allocation7 + $0x20] sm:$0xf]
    %v109 = vld [vmem:[#allocation7 + $0x24] sm:$0xf]
    %v110 = vld [vmem:[#allocation7 + $0x28] sm:$0xf]
    %v111 = vld [vmem:[#allocation7 + $0x2c] sm:$0xf]
    %v112 = vld [vmem:[#allocation7 + $0x30] sm:$0xf]
    %v113 = vld [vmem:[#allocation7 + $0x34] sm:$0xf]
    %v114 = vld [vmem:[#allocation7 + $0x38] sm:$0xf]
    %v115 = vld [vmem:[#allocation7 + $0x3c] sm:$0xf]
    %v132 = vunpack.c.l.b16 %v84
    %v133 = vunpack.c.l.b16 %v85
    %v134 = vunpack.c.l.b16 %v86
    %v135 = vunpack.c.l.b16 %v87
    %v136 = vunpack.c.l.b16 %v88
    %v137 = vunpack.c.l.b16 %v89
    %v138 = vunpack.c.l.b16 %v90
    %v139 = vunpack.c.l.b16 %v91
    %v140 = vunpack.c.l.b16 %v92
    %v141 = vunpack.c.l.b16 %v93
    %v142 = vunpack.c.l.b16 %v94
    %v143 = vunpack.c.l.b16 %v95
    %v144 = vunpack.c.l.b16 %v96
    %v145 = vunpack.c.l.b16 %v97
    %v146 = vunpack.c.l.b16 %v98
    %v147 = vunpack.c.l.b16 %v99
    %v148 = vpack.c.b16 %v133, %v132
    %v149 = vpack.c.b16 %v135, %v134
    %v150 = vpack.c.b16 %v137, %v136
    %v151 = vpack.c.b16 %v139, %v138
    %v152 = vpack.c.b16 %v141, %v140
    %v153 = vpack.c.b16 %v143, %v142
    %v154 = vpack.c.b16 %v145, %v144
    %v155 = vpack.c.b16 %v147, %v146
    %v180 = vunpack.c.l.b16 %v100
    %v181 = vunpack.c.l.b16 %v101
    %v182 = vunpack.c.l.b16 %v102
    %v183 = vunpack.c.l.b16 %v103
    %v184 = vunpack.c.l.b16 %v104
    %v185 = vunpack.c.l.b16 %v105
    %v186 = vunpack.c.l.b16 %v106
    %v187 = vunpack.c.l.b16 %v107
    %v188 = vunpack.c.l.b16 %v108
    %v189 = vunpack.c.l.b16 %v109
    %v190 = vunpack.c.l.b16 %v110
    %v191 = vunpack.c.l.b16 %v111
    %v192 = vunpack.c.l.b16 %v112
    %v193 = vunpack.c.l.b16 %v113
    %v194 = vunpack.c.l.b16 %v114
    %v195 = vunpack.c.l.b16 %v115
    %v196 = vpack.c.b16 %v181, %v180
    %v197 = vpack.c.b16 %v183, %v182
    %v198 = vpack.c.b16 %v185, %v184
    %v199 = vpack.c.b16 %v187, %v186
    %v200 = vpack.c.b16 %v189, %v188
    %v201 = vpack.c.b16 %v191, %v190
    %v202 = vpack.c.b16 %v193, %v192
    %v203 = vpack.c.b16 %v195, %v194
    %212 = vmatprep.subr.bf16.mxu0 0
    %213 = vmatpush1.bf16.msra.mxu0 %v196
    %214 = vmatprep.subr.bf16.mxu0 0
    %215 = vmatpush1.bf16.msra.mxu0 %v197
    %216 = vmatprep.subr.bf16.mxu0 0
    %217 = vmatpush1.bf16.msra.mxu0 %v198
    %218 = vmatprep.subr.bf16.mxu0 0
    %219 = vmatpush1.bf16.msra.mxu0 %v199
    %220 = vmatprep.subr.bf16.mxu0 0
    %221 = vmatpush1.bf16.msra.mxu0 %v200
    %222 = vmatprep.subr.bf16.mxu0 0
    %223 = vmatpush1.bf16.msra.mxu0 %v201
    %224 = vmatprep.subr.bf16.mxu0 0
    %225 = vmatpush1.bf16.msra.mxu0 %v202
    %226 = vmatprep.subr.bf16.mxu0 0
    %227 = vmatpush1.bf16.msra.mxu0 %v203
    %228 = vmatprep.subr.bf16.mxu0 0
    %229 = vmatpush1.bf16.msra.mxu0 0
    %230 = vmatprep.subr.bf16.mxu0 0
    %231 = vmatpush1.bf16.msra.mxu0 0
    %232 = vmatprep.subr.bf16.mxu0 0
    %233 = vmatpush1.bf16.msra.mxu0 0
    %234 = vmatprep.subr.bf16.mxu0 0
    %235 = vmatpush1.bf16.msra.mxu0 0
    %236 = vmatprep.subr.bf16.mxu0 0
    %237 = vmatpush1.bf16.msra.mxu0 0
    %238 = vmatprep.subr.bf16.mxu0 0
    %239 = vmatpush1.bf16.msra.mxu0 0
    %240 = vmatprep.subr.bf16.mxu0 0
    %241 = vmatpush1.bf16.msra.mxu0 0
    %242 = vmatprep.subr.bf16.mxu0 0
    %243 = vmatpush1.bf16.msra.mxu0 0
    %244 = vmatprep.mubr.bf16.mxu0 0
    %245 = vmatmul.mubr.bf16.gmra.mrb[0].mxu0 %v148
    %v246 = vpop.f32.mrb[0].mxu0
    %v247 = vadd.f32 0.0, %v246
    %v248 = vpop.f32.mrb[0].mxu0
    %v249 = vpop.f32.mrb[0].mxu0
    %v250 = vadd.f32 0.0, %v249
    %v251 = vpop.f32.mrb[0].mxu0
    %252 = vmatprep.mubr.bf16.mxu0 0
    %253 = vmatmul.mubr.bf16.gmra.mrb[0].mxu0 %v149
    %v254 = vpop.f32.mrb[0].mxu0
    %v255 = vadd.f32 0.0, %v254
    %v256 = vpop.f32.mrb[0].mxu0
    %v257 = vpop.f32.mrb[0].mxu0
    %v258 = vadd.f32 0.0, %v257
    %v259 = vpop.f32.mrb[0].mxu0
    %260 = vmatprep.mubr.bf16.mxu0 0
    %261 = vmatmul.mubr.bf16.gmra.mrb[0].mxu0 %v150
    %v262 = vpop.f32.mrb[0].mxu0
    %v263 = vadd.f32 0.0, %v262
    %v264 = vpop.f32.mrb[0].mxu0
    %v265 = vpop.f32.mrb[0].mxu0
    %v266 = vadd.f32 0.0, %v265
    %v267 = vpop.f32.mrb[0].mxu0
    %268 = vmatprep.mubr.bf16.mxu0 0
    %269 = vmatmul.mubr.bf16.gmra.mrb[0].mxu0 %v151
    %v270 = vpop.f32.mrb[0].mxu0
    %v271 = vadd.f32 0.0, %v270
    %v272 = vpop.f32.mrb[0].mxu0
    %v273 = vpop.f32.mrb[0].mxu0
    %v274 = vadd.f32 0.0, %v273
    %v275 = vpop.f32.mrb[0].mxu0
    %276 = vmatprep.mubr.bf16.mxu0 0
    %277 = vmatmul.mubr.bf16.gmra.mrb[0].mxu0 %v152
    %v278 = vpop.f32.mrb[0].mxu0
    %v279 = vadd.f32 0.0, %v278
    %v280 = vpop.f32.mrb[0].mxu0
    %v281 = vpop.f32.mrb[0].mxu0
    %v282 = vadd.f32 0.0, %v281
    %v283 = vpop.f32.mrb[0].mxu0
    %284 = vmatprep.mubr.bf16.mxu0 0
    %285 = vmatmul.mubr.bf16.gmra.mrb[0].mxu0 %v153
    %v286 = vpop.f32.mrb[0].mxu0
    %v287 = vadd.f32 0.0, %v286
    %v288 = vpop.f32.mrb[0].mxu0
    %v289 = vpop.f32.mrb[0].mxu0
    %v290 = vadd.f32 0.0, %v289
    %v291 = vpop.f32.mrb[0].mxu0
    %292 = vmatprep.mubr.bf16.mxu0 0
    %293 = vmatmul.mubr.bf16.gmra.mrb[0].mxu0 %v154
    %v294 = vpop.f32.mrb[0].mxu0
    %v295 = vadd.f32 0.0, %v294
    %v296 = vpop.f32.mrb[0].mxu0
    %v297 = vpop.f32.mrb[0].mxu0
    %v298 = vadd.f32 0.0, %v297
    %v299 = vpop.f32.mrb[0].mxu0
    %300 = vmatprep.mubr.bf16.mxu0 0
    %301 = vmatmul.mubr.bf16.gmra.mrb[0].mxu0 %v155
    %v302 = vpop.f32.mrb[0].mxu0
    %v303 = vadd.f32 0.0, %v302
    %v304 = vpop.f32.mrb[0].mxu0
    %v305 = vpop.f32.mrb[0].mxu0
    %v306 = vadd.f32 0.0, %v305
    %v307 = vpop.f32.mrb[0].mxu0
    %308 = vdwg.mxu0
    %v309 = vadd.f32 %v68, %v247
    %v310 = vadd.f32 %v69, %v250
    %v311 = vadd.f32 %v70, %v255
    %v312 = vadd.f32 %v71, %v258
    %v313 = vadd.f32 %v72, %v263
    %v314 = vadd.f32 %v73, %v266
    %v315 = vadd.f32 %v74, %v271
    %v316 = vadd.f32 %v75, %v274
    %v317 = vadd.f32 %v76, %v279
    %v318 = vadd.f32 %v77, %v282
    %v319 = vadd.f32 %v78, %v287
    %v320 = vadd.f32 %v79, %v290
    %v321 = vadd.f32 %v80, %v295
    %v322 = vadd.f32 %v81, %v298
    %v323 = vadd.f32 %v82, %v303
    %v324 = vadd.f32 %v83, %v306
    %325 = vst [vmem:[#allocation2] sm:$0xff] %v309
    %326 = vst [vmem:[#allocation2 + $0x8] sm:$0xff] %v310
    %327 = vst [vmem:[#allocation2 + $0x10] sm:$0xff] %v311
    %328 = vst [vmem:[#allocation2 + $0x18] sm:$0xff] %v312
    %329 = vst [vmem:[#allocation2 + $0x20] sm:$0xff] %v313
    %330 = vst [vmem:[#allocation2 + $0x28] sm:$0xff] %v314
    %331 = vst [vmem:[#allocation2 + $0x30] sm:$0xff] %v315
    %332 = vst [vmem:[#allocation2 + $0x38] sm:$0xff] %v316
    %333 = vst [vmem:[#allocation2 + $0x40] sm:$0xff] %v317
    %334 = vst [vmem:[#allocation2 + $0x48] sm:$0xff] %v318
    %335 = vst [vmem:[#allocation2 + $0x50] sm:$0xff] %v319
    %336 = vst [vmem:[#allocation2 + $0x58] sm:$0xff] %v320
    %337 = vst [vmem:[#allocation2 + $0x60] sm:$0xff] %v321
    %338 = vst [vmem:[#allocation2 + $0x68] sm:$0xff] %v322
    %339 = vst [vmem:[#allocation2 + $0x70] sm:$0xff] %v323
    %340 = vst [vmem:[#allocation2 + $0x78] sm:$0xff] %v324
    // Predicated region
    $region30: #{tpu_custom_call.1} parent=1 // pred_check
      %p341 = pneg %p48
    $region31: #{tpu_custom_call.1} parent=1 // pred_check_branch
      %343 = sbr.rel (%p341) target = $region33
    $region32: #{tpu_custom_call.1} parent=1 // pred_region
      %v344 = vld [vmem:[#allocation2] sm:$0xff]
      %v345 = vld [vmem:[#allocation2 + $0x8] sm:$0xff]
      %v346 = vld [vmem:[#allocation2 + $0x10] sm:$0xff]
      %v347 = vld [vmem:[#allocation2 + $0x18] sm:$0xff]
      %v348 = vld [vmem:[#allocation2 + $0x20] sm:$0xff]
      %v349 = vld [vmem:[#allocation2 + $0x28] sm:$0xff]
      %v350 = vld [vmem:[#allocation2 + $0x30] sm:$0xff]
      %v351 = vld [vmem:[#allocation2 + $0x38] sm:$0xff]
      %v352 = vld [vmem:[#allocation2 + $0x40] sm:$0xff]
      %v353 = vld [vmem:[#allocation2 + $0x48] sm:$0xff]
      %v354 = vld [vmem:[#allocation2 + $0x50] sm:$0xff]
      %v355 = vld [vmem:[#allocation2 + $0x58] sm:$0xff]
      %v356 = vld [vmem:[#allocation2 + $0x60] sm:$0xff]
      %v357 = vld [vmem:[#allocation2 + $0x68] sm:$0xff]
      %v358 = vld [vmem:[#allocation2 + $0x70] sm:$0xff]
      %v359 = vld [vmem:[#allocation2 + $0x78] sm:$0xff]
      %s360 = sld [smem:[#allocation3]]
      %v361 = vld [vmem:[%s3] sm:$0x1]
      %v362 = vstv %s360
      %v363 = vmul.f32 %v362, %v361
      %v365 = vlaneseq
      %v366 = vshrl.u32 %v365, 7
      %v367 = vsub.s32 0, %v366
      %v368 = vrot.slane %v363, %v367
      %v370 = vadd.f32 %v344, %v368
      %v371 = vadd.f32 %v345, %v368
      %v372 = vadd.f32 %v346, %v368
      %v373 = vadd.f32 %v347, %v368
      %v374 = vadd.f32 %v348, %v368
      %v375 = vadd.f32 %v349, %v368
      %v376 = vadd.f32 %v350, %v368
      %v377 = vadd.f32 %v351, %v368
      %v378 = vadd.f32 %v352, %v368
      %v379 = vadd.f32 %v353, %v368
      %v380 = vadd.f32 %v354, %v368
      %v381 = vadd.f32 %v355, %v368
      %v382 = vadd.f32 %v356, %v368
      %v383 = vadd.f32 %v357, %v368
      %v384 = vadd.f32 %v358, %v368
      %v385 = vadd.f32 %v359, %v368
      %386 = vst [vmem:[#allocation9] sm:$0xff] %v370
      %387 = vst [vmem:[#allocation9 + $0x8] sm:$0xff] %v371
      %388 = vst [vmem:[#allocation9 + $0x10] sm:$0xff] %v372
      %389 = vst [vmem:[#allocation9 + $0x18] sm:$0xff] %v373
      %390 = vst [vmem:[#allocation9 + $0x20] sm:$0xff] %v374
      %391 = vst [vmem:[#allocation9 + $0x28] sm:$0xff] %v375
      %392 = vst [vmem:[#allocation9 + $0x30] sm:$0xff] %v376
      %393 = vst [vmem:[#allocation9 + $0x38] sm:$0xff] %v377
      %394 = vst [vmem:[#allocation9 + $0x40] sm:$0xff] %v378
      %395 = vst [vmem:[#allocation9 + $0x48] sm:$0xff] %v379
      %396 = vst [vmem:[#allocation9 + $0x50] sm:$0xff] %v380
      %397 = vst [vmem:[#allocation9 + $0x58] sm:$0xff] %v381
      %398 = vst [vmem:[#allocation9 + $0x60] sm:$0xff] %v382
      %399 = vst [vmem:[#allocation9 + $0x68] sm:$0xff] %v383
      %400 = vst [vmem:[#allocation9 + $0x70] sm:$0xff] %v384
      %401 = vst [vmem:[#allocation9 + $0x78] sm:$0xff] %v385
    $region33: #{tpu_custom_call.1} parent=1 // pred_fallthru
      _
    // Predicated region
    $region34: #{tpu_custom_call.1} parent=1 // pred_check
      _
    $region35: #{tpu_custom_call.1} parent=1 // pred_check_branch
      %403 = sbr.rel (0) target = $region37
    $region36: #{tpu_custom_call.1} parent=1 // pred_region
      %s405 = ssub.s32 2048, 2048
      %406 = vsyncadd [#allocation6], %s405
      %s407 = sshll.u32 [#allocation9], 4
      %s408 = int_to_ptr.vmem [resolvable:$true] %s407
      %413 = dma.vmem_to_hbm [thread:$0]  %s408, 2048, %s4, [#allocation6], 128, 128, 8
    $region37: #{tpu_custom_call.1} parent=1 // pred_fallthru
      _
    // Predicated region
    $region38: #{tpu_custom_call.1} parent=1 // pred_check
      _
    $region39: #{tpu_custom_call.1} parent=1 // pred_check_branch
      %415 = sbr.rel (0) target = $region41
    $region40: #{tpu_custom_call.1} parent=1 // pred_region
      %416 = dma.done [#allocation6], 2048
    $region41: #{tpu_custom_call.1} parent=1 // pred_fallthru
      _
    %417 = vsyncpa [#allocation5], 1
    %418 = vsyncpa [#allocation8], 1
    %419 = vsyncpa [#allocation6], 1

</llo_original>
